<compile_context>
chip_gen: v5e
topology: v5e:2x2
jax: 0.10.0
libtpu: 0.0.40
codegen_flags: <defaults>
</compile_context>

<pallas_src>
import functools

import numpy as np
import jax
import jax.numpy as jnp
from jax.experimental import pallas as pl
from jax.experimental.pallas import tpu as pltpu


# ----------------------------------------------------------------------------
# Deterministic parameter ("buffer") construction, mirroring the PyTorch code.
# ----------------------------------------------------------------------------
def _precompute_mdct_matrix(length, window, transform="cosine"):
    """ModifiedDiscreteTransform._precompute: returns W of shape (L, L/2), f64."""
    L2 = length
    L = L2 // 2
    n = np.arange(L2, dtype=np.float64) + 0.5
    k = np.pi / L * n[:L]
    n = n + L / 2.0
    z = 2.0 / L
    if window != "rectangular" or window is True:
        z *= 2.0
    z = z ** 0.5
    if transform == "cosine":
        W = z * np.cos(k[None, :] * n[:, None])
    elif transform == "sine":
        W = z * np.sin(k[None, :] * n[:, None])
    else:
        raise ValueError("transform must be either 'cosine' or 'sine'.")
    return W  # (L2, L2 // 2), float64


def _precompute_window(length, window="sine"):
    """Window(..., norm='none') coefficients, f64."""
    n = np.arange(length, dtype=np.float64) + 0.5
    if window == "sine":
        return np.sin(np.pi * n / length)
    if window == "vorbis":
        return np.sin(0.5 * np.pi * np.sin(np.pi * n / length) ** 2)
    if window == "rectangular":
        return np.ones(length, dtype=np.float64)
    # TODO(synk): 'kbd' (Kaiser-Bessel-derived) window coefficients not ported.
    raise NotImplementedError(f"window '{window}' not implemented")


# ----------------------------------------------------------------------------
# Plain-XLA implementation: reference + fallback for lane-sparse / tiny inputs.
# ----------------------------------------------------------------------------
def _mdct_jax_reference(x, frame_length, window="sine", transform="cosine"):
    L = frame_length
    P = L // 2
    W = jnp.asarray(_precompute_mdct_matrix(L, window, transform), dtype=jnp.float32)
    w = jnp.asarray(_precompute_window(L, window), dtype=jnp.float32)
    pad_cfg = [(0, 0)] * (x.ndim - 1)
    xp = jnp.pad(x.astype(jnp.float32), pad_cfg + [(0, P)])           # MDCT pad
    xp = jnp.pad(xp, pad_cfg + [(L // 2, (L - 1) // 2)])              # Frame center pad
    n_frames = (xp.shape[-1] - L) // P + 1
    idx = jnp.arange(n_frames)[:, None] * P + jnp.arange(L)[None, :]
    frames = xp[..., idx] * w
    return jnp.einsum("...nl,lk->...nk", frames, W)


# ----------------------------------------------------------------------------
# Pallas kernel: out_j = chunk_j @ W_top + chunk_{j+1} @ W_bot  (window folded)
# ----------------------------------------------------------------------------
def _mdct_kernel(left_ref, bnd_ref, wt_ref, wb_ref, o_ref):
    # left_ref: (1, TM, P) bf16 -- chunks j .. j+TM-1        (auto-pipelined)
    # bnd_ref:  (1, 8,  P) bf16 -- chunks j+TM .. j+TM+7     (only row 0 is used)
    # wt_ref:   (P, K)     bf16 -- window-folded MDCT matrix, top half (resident)
    # wb_ref:   (P, K)     bf16 -- bottom half (resident)
    # o_ref:    (1, TM, K) f32
    left = left_ref[0]                                                    # (TM, P) bf16
    # Both big matmuls reuse the SAME resident left operand (each chunk is read from
    # HBM exactly once).  bf16 x bf16 -> f32 accumulation on the MXU.
    top = jnp.dot(left, wt_ref[...], preferred_element_type=jnp.float32)  # (TM, K)
    bot = jnp.dot(left, wb_ref[...], preferred_element_type=jnp.float32)  # (TM, K)
    # Row TM-1 of the shifted operand is chunk j+TM, i.e. the first row of the next
    # tile; it arrives via the tiny boundary slab.
    bnd = bnd_ref[0][:1, :]                                               # (1, P) bf16
    bnd_bot = jnp.dot(bnd, wb_ref[...], preferred_element_type=jnp.float32)  # (1, K)
    # "+1" row shift applied on the f32 results (XLU slice + concat, no extra HBM / MXU
    # work), then one full, unmasked, lane-dense store.
    shifted = jnp.concatenate([bot[1:, :], bnd_bot], axis=0)              # (TM, K)
    o_ref[0] = top + shifted


def _pick_row_tile(n_frames, batch, hop):
    """Row tile (multiple of 8, <= n_frames). Caller guarantees n_frames >= 8."""
    floor8 = lambda v: (v // 8) * 8
    # Keep per-step VMEM modest when the frame length (hence P = K = L/2) is very large.
    cap = 512 if hop <= 512 else (256 if hop <= 1024 else 128)
    if batch == 1 and 128 <= n_frames < 2 * cap:
        # Single batch row: split into >= 2 grid steps so a multi-TensorCore part (v7x)
        # can share the tile axis.  With batch >= 2 the batch grid axis already provides
        # that parallelism, so take the biggest tile (fewer grid steps on v5e/v6e too).
        return floor8(n_frames // 2)
    return min(cap, floor8(n_frames))


def _mdct_pallas(x, frame_length, window, transform):
    L = frame_length
    P = L // 2          # hop size == chunk size
    K = L // 2          # coefficients per frame

    # Fold the window into the transform matrix (algebraically identical), store bf16.
    W = _precompute_mdct_matrix(L, window, transform)            # (L, K) f64
    win = _precompute_window(L, window)                          # (L,)   f64
    Ww = win[:, None] * W                                        # (L, K)
    w_top = jnp.asarray(Ww[:P], dtype=jnp.bfloat16)              # (P, K)
    w_bot = jnp.asarray(Ww[P:], dtype=jnp.bfloat16)              # (P, K)

    lead = x.shape[:-1]
    T = x.shape[-1]
    B = int(np.prod(lead)) if lead else 1
    x2 = jnp.reshape(x, (B, T))

    n_frames = -(-T // P) + 1            # ceil(T/P) + 1, matches the reference
    TM = _pick_row_tile(n_frames, B, P)
    n_tiles = -(-n_frames // TM)
    nf_p = n_tiles * TM                  # frame rows covered by full tiles (>= n_frames)
    NC = nf_p + 8                        # chunk rows: +8 aligned slab for the "+1" boundary row

    # All original padding (MDCT right pad, Frame center pads) is zeros, so the padded
    # signal is simply [P zeros | x | zeros...]; cast to bf16 (halves HBM read traffic)
    # and reshape ONCE into P-sample chunks.
    total = NC * P
    x_pad = jnp.pad(x2.astype(jnp.bfloat16), ((0, 0), (P, total - P - T)))
    chunks = x_pad.reshape(B, NC, P)

    # VMEM budget (bf16 operands, f32 output tile), assuming double-buffering everywhere.
    vmem_est = (2 * TM * P * 2) + (2 * 8 * P * 2) + (2 * 2 * P * K * 2) + (2 * TM * K * 4)
    compiler_kwargs = dict(dimension_semantics=("parallel", "parallel"))
    if vmem_est > 16 * 2**20:
        # TODO(synk): for very large L (W halves of several MiB) single-buffer the constant
        # W blocks / stream W over a K grid axis instead of keeping both halves resident
        # (v7x only has 64 MiB VMEM per TensorCore), rather than just raising the limit.
        compiler_kwargs["vmem_limit_bytes"] = int(min(2 * vmem_est, 40 * 2**20))

    out = pl.pallas_call(
        _mdct_kernel,
        out_shape=jax.ShapeDtypeStruct((B, n_frames, K), jnp.float32),
        grid_spec=pltpu.PrefetchScalarGridSpec(
            num_scalar_prefetch=0,
            grid=(B, n_tiles),
            in_specs=[
                # Left chunks j .. j+TM-1 of tile i.
                pl.BlockSpec((1, TM, P), lambda b, i: (b, i, 0)),
                # Aligned 8-row boundary slab starting at chunk (i+1)*TM (only row 0 used).
                pl.BlockSpec((1, 8, P), lambda b, i: (b, (i + 1) * (TM // 8), 0)),
                # Window-folded MDCT matrix halves (constant across the grid).
                pl.BlockSpec((P, K), lambda b, i: (0, 0)),
                pl.BlockSpec((P, K), lambda b, i: (0, 0)),
            ],
            out_specs=pl.BlockSpec((1, TM, K), lambda b, i: (b, i, 0)),
        ),
        compiler_params=pltpu.CompilerParams(**compiler_kwargs),
    )(chunks, chunks, w_top, w_bot)

    return out.reshape(lead + (n_frames, K))


def mdct(x, frame_length, window="sine", transform="cosine"):
    """Modified discrete cosine transform, x: (..., T) -> (..., N, L/2)."""
    L = frame_length
    assert L >= 2 and L % 2 == 0
    P = L // 2
    n_frames = -(-x.shape[-1] // P) + 1
    if (L // 2) % 128 != 0 or n_frames < 8:
        # Lane-density guard / tiny-signal guard: with L/2 not a multiple of 128 the MXU
        # columns and output stores would be mostly masked; plain XLA is better there.
        return _mdct_jax_reference(x, L, window, transform)
    return _mdct_pallas(x, L, window, transform)


# ----------------------------------------------------------------------------
if __name__ == "__main__":
    key = jax.random.PRNGKey(0)
    B1, B2, T, L = 2, 3, 4000, 256
    x = jax.random.normal(key, (B1, B2, T), dtype=jnp.float32)

    mdct_fn = jax.jit(functools.partial(mdct, frame_length=L, window="sine"))
    y = jax.block_until_ready(mdct_fn(x))

    P = L // 2
    n_frames = -(-T // P) + 1
    assert y.shape == (B1, B2, n_frames, L // 2), y.shape

    y_ref = jax.block_until_ready(_mdct_jax_reference(x, L, "sine"))
    y_np, ref_np = np.asarray(y), np.asarray(y_ref)
    # bf16 operands on the MXU => ~1e-3 relative error; check elementwise and globally.
    np.testing.assert_allclose(y_np, ref_np, rtol=5e-2, atol=5e-2)
    rel = np.linalg.norm(y_np - ref_np) / np.linalg.norm(ref_np)
    assert rel < 1e-2, rel

    # Small frame lengths take the lane-density fallback path (plain XLA).
    y_small = jax.block_until_ready(mdct(x[0, 0], frame_length=16))
    assert y_small.shape == (-(-T // 8) + 1, 8), y_small.shape

    print("KERNEL_OK")
</pallas_src>

<mosaic_0001>
module attributes {stable_mosaic.version = 11 : i64} {
  func.func @_mdct_kernel(%arg0: i32, %arg1: i32, %arg2: memref<1x32x128xbf16, #tpu.memory_space<vmem>>, %arg3: memref<1x8x128xbf16, #tpu.memory_space<vmem>>, %arg4: memref<128x128xbf16, #tpu.memory_space<vmem>>, %arg5: memref<128x128xbf16, #tpu.memory_space<vmem>>, %arg6: memref<1x32x128xf32, #tpu.memory_space<vmem>>) attributes {dimension_semantics = [#tpu.dimension_semantics<parallel>, #tpu.dimension_semantics<parallel>], iteration_bounds = array<i64: 6, 2>, scalar_prefetch = 0 : i64, scratch_operands = 0 : i64, tpu.core_type = #tpu.core_type<tc>, window_params = [{transform_indices = @transform_0, window_bounds = array<i64: 1, 32, 128>}, {transform_indices = @transform_1, window_bounds = array<i64: 1, 8, 128>}, {pipeline_mode = #tpu.pipeline_mode<synchronous>, transform_indices = @transform_2, window_bounds = array<i64: 128, 128>}, {pipeline_mode = #tpu.pipeline_mode<synchronous>, transform_indices = @transform_3, window_bounds = array<i64: 128, 128>}, {transform_indices = @transform_4, window_bounds = array<i64: 1, 32, 128>}]} {
    %c0 = arith.constant 0 : index
    %c0_0 = arith.constant 0 : index
    %c0_1 = arith.constant 0 : index
    %0 = vector.load %arg2[%c0, %c0_0, %c0_1] : memref<1x32x128xbf16, #tpu.memory_space<vmem>>, vector<1x32x128xbf16>
    %1 = vector.shape_cast %0 : vector<1x32x128xbf16> to vector<32x128xbf16>
    %c0_2 = arith.constant 0 : index
    %c0_3 = arith.constant 0 : index
    %2 = vector.load %arg4[%c0_2, %c0_3] : memref<128x128xbf16, #tpu.memory_space<vmem>>, vector<128x128xbf16>
    %cst = arith.constant dense<0.000000e+00> : vector<32x128xf32>
    %3 = tpu.matmul %1, %2, %cst {dimension_numbers = #tpu.dot_dimension_numbers<[1], [0], [0], [1], [0, 0, 1, 1], [], []>} : vector<32x128xbf16>, vector<128x128xbf16>, vector<32x128xf32> -> vector<32x128xf32>
    %c0_4 = arith.constant 0 : index
    %c0_5 = arith.constant 0 : index
    %4 = vector.load %arg5[%c0_4, %c0_5] : memref<128x128xbf16, #tpu.memory_space<vmem>>, vector<128x128xbf16>
    %cst_6 = arith.constant dense<0.000000e+00> : vector<32x128xf32>
    %5 = tpu.matmul %1, %4, %cst_6 {dimension_numbers = #tpu.dot_dimension_numbers<[1], [0], [0], [1], [0, 0, 1, 1], [], []>} : vector<32x128xbf16>, vector<128x128xbf16>, vector<32x128xf32> -> vector<32x128xf32>
    %c0_7 = arith.constant 0 : index
    %c0_8 = arith.constant 0 : index
    %c0_9 = arith.constant 0 : index
    %6 = vector.load %arg3[%c0_7, %c0_8, %c0_9] : memref<1x8x128xbf16, #tpu.memory_space<vmem>>, vector<1x8x128xbf16>
    %7 = vector.shape_cast %6 : vector<1x8x128xbf16> to vector<8x128xbf16>
    %8 = vector.extract_strided_slice %7 {offsets = [0, 0], sizes = [1, 128], strides = [1, 1]} : vector<8x128xbf16> to vector<1x128xbf16>
    %c0_10 = arith.constant 0 : index
    %c0_11 = arith.constant 0 : index
    %9 = vector.load %arg5[%c0_10, %c0_11] : memref<128x128xbf16, #tpu.memory_space<vmem>>, vector<128x128xbf16>
    %cst_12 = arith.constant dense<0.000000e+00> : vector<1x128xf32>
    %10 = tpu.matmul %8, %9, %cst_12 {dimension_numbers = #tpu.dot_dimension_numbers<[1], [0], [0], [1], [0, 0, 1, 1], [], []>} : vector<1x128xbf16>, vector<128x128xbf16>, vector<1x128xf32> -> vector<1x128xf32>
    %11 = vector.extract_strided_slice %5 {offsets = [1, 0], sizes = [31, 128], strides = [1, 1]} : vector<32x128xf32> to vector<31x128xf32>
    %12 = tpu.concatenate %11, %10 in 0 : vector<31x128xf32>, vector<1x128xf32> -> vector<32x128xf32>
    %13 = arith.addf %3, %12 : vector<32x128xf32>
    %c0_13 = arith.constant 0 : index
    %c0_14 = arith.constant 0 : index
    %c0_15 = arith.constant 0 : index
    %14 = vector.load %arg6[%c0_13, %c0_14, %c0_15] : memref<1x32x128xf32, #tpu.memory_space<vmem>>, vector<1x32x128xf32>
    %15 = vector.shape_cast %14 : vector<1x32x128xf32> to vector<32x128xf32>
    %16 = vector.shape_cast %13 : vector<32x128xf32> to vector<1x32x128xf32>
    tpu.vector_store %arg6[%c0_13, %c0_14, %c0_15], %16 {strides = array<i32>} : memref<1x32x128xf32, #tpu.memory_space<vmem>>, vector<1x32x128xf32>,
    return
  }
  func.func @transform_0(%arg0: i32, %arg1: i32) -> (i32, i32, i32) {
    %c0_i32 = arith.constant 0 : i32
    %c0_i32_0 = arith.constant 0 : i32
    return %arg0, %arg1, %c0_i32 : i32, i32, i32
  }
  func.func @transform_1(%arg0: i32, %arg1: i32) -> (i32, i32, i32) {
    %c1_i32 = arith.constant 1 : i32
    %0 = arith.addi %arg1, %c1_i32 : i32
    %c4_i32 = arith.constant 4 : i32
    %1 = arith.muli %0, %c4_i32 : i32
    %c0_i32 = arith.constant 0 : i32
    %c0_i32_0 = arith.constant 0 : i32
    return %arg0, %1, %c0_i32 : i32, i32, i32
  }
  func.func @transform_2(%arg0: i32, %arg1: i32) -> (i32, i32) {
    %c0_i32 = arith.constant 0 : i32
    %c0_i32_0 = arith.constant 0 : i32
    %c0_i32_1 = arith.constant 0 : i32
    return %c0_i32, %c0_i32_0 : i32, i32
  }
  func.func @transform_3(%arg0: i32, %arg1: i32) -> (i32, i32) {
    %c0_i32 = arith.constant 0 : i32
    %c0_i32_0 = arith.constant 0 : i32
    %c0_i32_1 = arith.constant 0 : i32
    return %c0_i32, %c0_i32_0 : i32, i32
  }
  func.func @transform_4(%arg0: i32, %arg1: i32) -> (i32, i32, i32) {
    %c0_i32 = arith.constant 0 : i32
    %c0_i32_0 = arith.constant 0 : i32
    return %arg0, %arg1, %c0_i32 : i32, i32, i32
  }
}

</mosaic_0001>

<llo_original>
// kernel: mdct.1
$region0: #{mdct.1}
  #allocation0 [shape = 'u32[]', space=smem, size = 0x4, offset = 0x4, fixed_abs, tag = 'smem constant byte address 0x4 - core index']
  #allocation1 [shape = 'u32[72,128]{1,0:T(1,128)}', space=vmem, size = 0x9000, scoped, tag = 'internal scratch']
  %s0 = inlined_call_operand.vmem [shape: bf16[6,72,128], index: 0, kind: input, shape index: {}, may-alias: {0,1}]
  %s1 = inlined_call_operand.vmem [shape: bf16[6,72,128], index: 1, kind: input, shape index: {}, may-alias: {0,1}]
  %s2 = inlined_call_operand.vmem [shape: bf16[128,128], index: 2, kind: input, shape index: {}]
  %s3 = inlined_call_operand.vmem [shape: bf16[128,128], index: 3, kind: input, shape index: {}]
  %s4 = inlined_call_operand.vmem [shape: f32[6,33,128], index: 4, kind: output, shape index: {}]
  %s5 = sld [smem:[#allocation0]]
  $region97: #{mdct.1} parent=0
    _
  %s7 = ssub.s32 1, %s5
  %s8 = scalar_select 0, %s7, %s5
  $region1: #{mdct.1} parent=0
    #allocation2 [shape = 'u8[32768]{0}', space=vmem, size = 0x8000, scoped, tag = 'output window, operand 0']
    loop: start=0, step=1, limit=14
    $region2: #{mdct.1} parent=1 // loop_pre_header
      _
    $region3: #{mdct.1} parent=1 // loop_header
      %s10 = sphi 0, %s14
      %p11 = scmp.ge.s32.totalorder %s10, 14
      %s17 = sphi 0, %s29
      %s18 = sphi 0, %s25
      %s19 = sphi 0, %s17
      %s20 = sphi 0, %s18
      %s21 = sphi 0, %s19
      %s22 = sphi 0, %s20
      %s34 = sphi 0, %s36
      %s37 = sphi 0, %s34
      %s38 = sphi 0, %s37
      %s54 = sphi 0, %s38
      %s66 = sphi 0, %s68
      %s69 = sphi 0, %s66
      %s70 = sphi 0, %s69
      %s86 = sphi 0, %s70
      %s90 = sphi 0, %s90
      %s92 = sphi 0, %s90
      %s93 = sphi 0, %s92
      %s107 = sphi 0, %s93
      %s111 = sphi 0, %s111
      %s113 = sphi 0, %s111
      %s114 = sphi 0, %s113
      %s128 = sphi 0, %s114
      %s136 = sphi 0, %s138
      %s139 = sphi 0, %s136
      %s140 = sphi 0, %s139
      %s156 = sphi 0, %s140
    $region4: #{mdct.1} parent=1 // loop_header_branch
      %13 = sbr.rel (%p11) target = $region8
    $region5: #{mdct.1} parent=1 // loop_body
      %s15 = ssub.s32 %s10, 1
      %s16 = ssub.s32 %s10, 2
      %s23 = sadd.s32 1, %s18
      %p24 = scmp.ge.s32.totalorder %s23, 2
      %s25 = scalar_select %p24, 0, %s23
      %s26 = sadd.s32 1, %s17
      %s27 = scalar_select %p24, %s26, %s17
      %p28 = scmp.ge.s32.totalorder %s27, 6
      %s29 = scalar_select %p28, 0, %s27
      %s30 = ssub.s32 %s17, %s29
      %s31 = ssub.s32 %s18, %s25
      %s32 = sor.u32 %s30, %s31
      %p33 = scmp.eq.s32.totalorder %s32, 0
      %s35 = sadd.s32 %s34, 1
      %s36 = scalar_select %p33, %s34, %s35
      %p39 = pneg %p33
      %p40 = scmp.eq.s32.totalorder %s10, 11
      %p41 = por %p39, %p40
      %p42 = scmp.ne.s32.totalorder %s34, %s37
      %p43 = scmp.eq.s32.totalorder %s10, 0
      %p44 = por %p42, %p43
      %p45 = scmp.ne.s32.totalorder %s34, %s37
      %p46 = scmp.eq.s32.totalorder %s15, 11
      %p47 = por %p45, %p46
      %p48 = scmp.ne.s32.totalorder %s37, %s38
      %p49 = scmp.eq.s32.totalorder %s15, 0
      %p50 = por %p48, %p49
      %p51 = scmp.ne.s32.totalorder %s37, %s38
      %p52 = scmp.eq.s32.totalorder %s16, 11
      %p53 = por %p51, %p52
      %p55 = scmp.ne.s32.totalorder %s38, %s54
      %p56 = scmp.eq.s32.totalorder %s16, 0
      %p57 = por %p55, %p56
      %s58 = sadd.s32 %s18, 1
      %s59 = smul.u32 %s58, 4
      %s60 = sadd.s32 %s25, 1
      %s61 = smul.u32 %s60, 4
      %s62 = ssub.s32 %s17, %s29
      %s63 = ssub.s32 %s59, %s61
      %s64 = sor.u32 %s62, %s63
      %p65 = scmp.eq.s32.totalorder %s64, 0
      %s67 = sadd.s32 %s66, 1
      %s68 = scalar_select %p65, %s66, %s67
      %p71 = pneg %p65
      %p72 = scmp.eq.s32.totalorder %s10, 11
      %p73 = por %p71, %p72
      %p74 = scmp.ne.s32.totalorder %s66, %s69
      %p75 = scmp.eq.s32.totalorder %s10, 0
      %p76 = por %p74, %p75
      %p77 = scmp.ne.s32.totalorder %s66, %s69
      %p78 = scmp.eq.s32.totalorder %s15, 11
      %p79 = por %p77, %p78
      %p80 = scmp.ne.s32.totalorder %s69, %s70
      %p81 = scmp.eq.s32.totalorder %s15, 0
      %p82 = por %p80, %p81
      %p83 = scmp.ne.s32.totalorder %s69, %s70
      %p84 = scmp.eq.s32.totalorder %s16, 11
      %p85 = por %p83, %p84
      %p87 = scmp.ne.s32.totalorder %s70, %s86
      %p88 = scmp.eq.s32.totalorder %s16, 0
      %p89 = por %p87, %p88
      %s91 = sadd.s32 %s90, 1
      %p94 = scmp.eq.s32.totalorder %s10, 11
      %p95 = scmp.ne.s32.totalorder %s90, %s92
      %p96 = scmp.eq.s32.totalorder %s10, 0
      %p97 = por %p95, %p96
      %p98 = scmp.ne.s32.totalorder %s90, %s92
      %p99 = scmp.eq.s32.totalorder %s15, 11
      %p100 = por %p98, %p99
      %p101 = scmp.ne.s32.totalorder %s92, %s93
      %p102 = scmp.eq.s32.totalorder %s15, 0
      %p103 = por %p101, %p102
      %p104 = scmp.ne.s32.totalorder %s92, %s93
      %p105 = scmp.eq.s32.totalorder %s16, 11
      %p106 = por %p104, %p105
      %p108 = scmp.ne.s32.totalorder %s93, %s107
      %p109 = scmp.eq.s32.totalorder %s16, 0
      %p110 = por %p108, %p109
      %s112 = sadd.s32 %s111, 1
      %p115 = scmp.eq.s32.totalorder %s10, 11
      %p116 = scmp.ne.s32.totalorder %s111, %s113
      %p117 = scmp.eq.s32.totalorder %s10, 0
      %p118 = por %p116, %p117
      %p119 = scmp.ne.s32.totalorder %s111, %s113
      %p120 = scmp.eq.s32.totalorder %s15, 11
      %p121 = por %p119, %p120
      %p122 = scmp.ne.s32.totalorder %s113, %s114
      %p123 = scmp.eq.s32.totalorder %s15, 0
      %p124 = por %p122, %p123
      %p125 = scmp.ne.s32.totalorder %s113, %s114
      %p126 = scmp.eq.s32.totalorder %s16, 11
      %p127 = por %p125, %p126
      %p129 = scmp.ne.s32.totalorder %s114, %s128
      %p130 = scmp.eq.s32.totalorder %s16, 0
      %p131 = por %p129, %p130
      %s132 = ssub.s32 %s17, %s29
      %s133 = ssub.s32 %s18, %s25
      %s134 = sor.u32 %s132, %s133
      %p135 = scmp.eq.s32.totalorder %s134, 0
      %s137 = sadd.s32 %s136, 1
      %s138 = scalar_select %p135, %s136, %s137
      %p141 = pneg %p135
      %p142 = scmp.eq.s32.totalorder %s10, 11
      %p143 = por %p141, %p142
      %p144 = scmp.ne.s32.totalorder %s136, %s139
      %p145 = scmp.eq.s32.totalorder %s10, 0
      %p146 = por %p144, %p145
      %p147 = scmp.ne.s32.totalorder %s136, %s139
      %p148 = scmp.eq.s32.totalorder %s15, 11
      %p149 = por %p147, %p148
      %p150 = scmp.ne.s32.totalorder %s139, %s140
      %p151 = scmp.eq.s32.totalorder %s15, 0
      %p152 = por %p150, %p151
      %p153 = scmp.ne.s32.totalorder %s139, %s140
      %p154 = scmp.eq.s32.totalorder %s16, 11
      %p155 = por %p153, %p154
      %p157 = scmp.ne.s32.totalorder %s140, %s156
      %p158 = scmp.eq.s32.totalorder %s16, 0
      %p159 = por %p157, %p158
      %p160 = scmp.le.s32.totalorder 1, %s10
      %p161 = scmp.lt.s32.totalorder %s10, 13
      %p162 = pnand %p160, %p161
      %p163 = pneg %p162
      // Predicated region
      $region9: #{mdct.1} parent=5 // pred_check
        _
      $region10: #{mdct.1} parent=5 // pred_check_branch
        %165 = sbr.rel (%p162) target = $region12
      $region11: #{mdct.1} parent=5 // pred_region
        %s166 = ssub.s32 %s10, 1
        // Predicated region
        $region13: #{mdct.1} parent=11 // pred_check
          %p167 = pneg %p103
        $region14: #{mdct.1} parent=11 // pred_check_branch
          %169 = sbr.rel (%p167) target = $region16
        $region15: #{mdct.1} parent=11 // pred_region
          _
        $region16: #{mdct.1} parent=11 // pred_fallthru
          _
        // Predicated region
        $region17: #{mdct.1} parent=11 // pred_check
          %p170 = pneg %p124
        $region18: #{mdct.1} parent=11 // pred_check_branch
          %172 = sbr.rel (%p170) target = $region20
        $region19: #{mdct.1} parent=11 // pred_region
          _
        $region20: #{mdct.1} parent=11 // pred_fallthru
          _
      $region12: #{mdct.1} parent=5 // pred_fallthru
        _
      %p173 = scmp.lt.s32.totalorder %s10, 12
      // Predicated region
      $region21: #{mdct.1} parent=5 // pred_check
        %p174 = pneg %p173
      $region22: #{mdct.1} parent=5 // pred_check_branch
        %176 = sbr.rel (%p174) target = $region24
      $region23: #{mdct.1} parent=5 // pred_region
        // Predicated region
        $region25: #{mdct.1} parent=23 // pred_check
          %p177 = pneg %p44
        $region26: #{mdct.1} parent=23 // pred_check_branch
          %179 = sbr.rel (%p177) target = $region28
        $region27: #{mdct.1} parent=23 // pred_region
          %s180 = smul.u32 4, %s18
          %s181 = ssub.s32 9, %s180
          %p182 = scmp.lt.s32.totalorder %s181, 4
          %s183 = scalar_select %p182, %s181, 4
          %s184 = smul.u32 4, %s183
          %p185 = scmp.lt.s32.totalorder %s17, 5
          %s186 = scalar_select %p185, %s17, 5
          %p187 = scmp.lt.s32.totalorder %s180, 8
          %s188 = scalar_select %p187, %s180, 8
          %s189 = smul.addr %s186, 9
          %s190 = sadd.s32 %s188, %s189
          %s191 = smul.addr %s190, 4
          %s192 = scalar_lea.vmem %s0, %s191
          %s193 = smul.u32 4, %s18
          %s194 = ssub.s32 9, %s193
          %p195 = scmp.lt.s32.totalorder %s194, 4
          %s196 = scalar_select %p195, %s194, 4
          %s197 = smul.u32 4, %s196
        $region28: #{mdct.1} parent=23 // pred_fallthru
          _
        // Predicated region
        $region29: #{mdct.1} parent=23 // pred_check
          %p198 = pneg %p76
        $region30: #{mdct.1} parent=23 // pred_check_branch
          %200 = sbr.rel (%p198) target = $region32
        $region31: #{mdct.1} parent=23 // pred_region
          %s201 = sadd.s32 %s18, 1
          %s202 = smul.u32 %s201, 4
          %p203 = scmp.lt.s32.totalorder %s17, 5
          %s204 = scalar_select %p203, %s17, 5
          %p205 = scmp.lt.s32.totalorder %s202, 8
          %s206 = scalar_select %p205, %s202, 8
          %s207 = smul.addr %s204, 9
          %s208 = sadd.s32 %s206, %s207
          %s209 = smul.addr %s208, 4
          %s210 = scalar_lea.vmem %s1, %s209
          %s211 = sadd.s32 %s18, 1
          %s212 = smul.u32 %s211, 4
        $region32: #{mdct.1} parent=23 // pred_fallthru
          _
      $region24: #{mdct.1} parent=5 // pred_fallthru
        _
      %p213 = scmp.le.s32.totalorder 1, %s10
      %p214 = scmp.lt.s32.totalorder %s10, 13
      %p215 = pnand %p213, %p214
      %p216 = pneg %p215
      // Predicated region
      $region33: #{mdct.1} parent=5 // pred_check
        _
      $region34: #{mdct.1} parent=5 // pred_check_branch
        %218 = sbr.rel (%p215) target = $region36
      $region35: #{mdct.1} parent=5 // pred_region
        %s219 = ssub.s32 %s10, 1
        %s220 = smul.u32 4, %s20
        %s221 = ssub.s32 9, %s220
        %p222 = scmp.lt.s32.totalorder %s221, 4
        %s223 = scalar_select %p222, %s221, 4
        %s224 = smul.u32 4, %s223
        %p225 = scmp.lt.s32.totalorder %s19, 5
        %s226 = scalar_select %p225, %s19, 5
        %p227 = scmp.lt.s32.totalorder %s220, 8
        %s228 = scalar_select %p227, %s220, 8
        %s229 = smul.addr %s226, 9
        %s230 = sadd.s32 %s228, %s229
        %s231 = smul.addr %s230, 4
        %s232 = scalar_lea.vmem %s0, %s231
        %p233 = pneg %p50
        %p234 = pneg %p47
        %s235 = sadd.s32 %s20, 1
        %s236 = smul.u32 %s235, 4
        %p237 = scmp.lt.s32.totalorder %s19, 5
        %s238 = scalar_select %p237, %s19, 5
        %p239 = scmp.lt.s32.totalorder %s236, 8
        %s240 = scalar_select %p239, %s236, 8
        %s241 = smul.addr %s238, 9
        %s242 = sadd.s32 %s240, %s241
        %s243 = smul.addr %s242, 4
        %s244 = scalar_lea.vmem %s1, %s243
        %p245 = pneg %p82
        %p246 = pneg %p79
        %p247 = pneg %p103
        %p248 = pneg %p100
        %p249 = pneg %p124
        %p250 = pneg %p121
        %p251 = pneg %p152
        %p252 = pneg %p149
        %s253 = sand.u32 %s139, 1
        %s254 = sand.u32 %s139, 1
        %s255 = smul.addr %s254, 32
        %s256 = scalar_lea.vmem [#allocation2], %s255
        %s257 = smul.u32 4, %s20
        %s258 = ssub.s32 9, %s257
        %p259 = scmp.lt.s32.totalorder %s258, 4
        %s260 = scalar_select %p259, %s258, 4
        %s261 = smul.u32 4, %s260
        %p262 = scmp.lt.s32.totalorder %s19, 5
        %s263 = scalar_select %p262, %s19, 5
        %p264 = scmp.lt.s32.totalorder %s257, 8
        %s265 = scalar_select %p264, %s257, 8
        %s266 = smul.addr %s263, 9
        %s267 = sadd.s32 %s265, %s266
        %s268 = smul.addr %s267, 4
        %s269 = scalar_lea.vmem %s0, %s268
        %s270 = smul.u32 4, %s20
        %s271 = ssub.s32 9, %s270
        %p272 = scmp.lt.s32.totalorder %s271, 4
        %s273 = scalar_select %p272, %s271, 4
        %s274 = smul.u32 4, %s273
        %s275 = sadd.s32 %s20, 1
        %s276 = smul.u32 %s275, 4
        %p277 = scmp.lt.s32.totalorder %s19, 5
        %s278 = scalar_select %p277, %s19, 5
        %p279 = scmp.lt.s32.totalorder %s276, 8
        %s280 = scalar_select %p279, %s276, 8
        %s281 = smul.addr %s278, 9
        %s282 = sadd.s32 %s280, %s281
        %s283 = smul.addr %s282, 4
        %s284 = scalar_lea.vmem %s1, %s283
        %s285 = sadd.s32 %s20, 1
        %s286 = smul.u32 %s285, 4
        %s287 = smul.u32 4, %s20
        %s288 = ssub.s32 5, %s287
        %p289 = scmp.lt.s32.totalorder %s288, 4
        %s290 = scalar_select %p289, %s288, 4
        %s291 = smul.u32 8, %s290
        %v292 = vld [vmem:[%s269] sm:$0xf]
        %v293 = vld [vmem:[%s269 + $0x4] sm:$0xf]
        %v294 = vld [vmem:[%s269 + $0x8] sm:$0xf]
        %v295 = vld [vmem:[%s269 + $0xc] sm:$0xf]
        %v296 = vld [vmem:[%s2] sm:$0xf]
        %v297 = vld [vmem:[%s2 + $0x4] sm:$0xf]
        %v298 = vld [vmem:[%s2 + $0x8] sm:$0xf]
        %v299 = vld [vmem:[%s2 + $0xc] sm:$0xf]
        %v300 = vld [vmem:[%s2 + $0x10] sm:$0xf]
        %v301 = vld [vmem:[%s2 + $0x14] sm:$0xf]
        %v302 = vld [vmem:[%s2 + $0x18] sm:$0xf]
        %v303 = vld [vmem:[%s2 + $0x1c] sm:$0xf]
        %v304 = vld [vmem:[%s2 + $0x20] sm:$0xf]
        %v305 = vld [vmem:[%s2 + $0x24] sm:$0xf]
        %v306 = vld [vmem:[%s2 + $0x28] sm:$0xf]
        %v307 = vld [vmem:[%s2 + $0x2c] sm:$0xf]
        %v308 = vld [vmem:[%s2 + $0x30] sm:$0xf]
        %v309 = vld [vmem:[%s2 + $0x34] sm:$0xf]
        %v310 = vld [vmem:[%s2 + $0x38] sm:$0xf]
        %v311 = vld [vmem:[%s2 + $0x3c] sm:$0xf]
        %v312 = vld [vmem:[%s3] sm:$0xf]
        %v313 = vld [vmem:[%s3 + $0x4] sm:$0xf]
        %v314 = vld [vmem:[%s3 + $0x8] sm:$0xf]
        %v315 = vld [vmem:[%s3 + $0xc] sm:$0xf]
        %v316 = vld [vmem:[%s3 + $0x10] sm:$0xf]
        %v317 = vld [vmem:[%s3 + $0x14] sm:$0xf]
        %v318 = vld [vmem:[%s3 + $0x18] sm:$0xf]
        %v319 = vld [vmem:[%s3 + $0x1c] sm:$0xf]
        %v320 = vld [vmem:[%s3 + $0x20] sm:$0xf]
        %v321 = vld [vmem:[%s3 + $0x24] sm:$0xf]
        %v322 = vld [vmem:[%s3 + $0x28] sm:$0xf]
        %v323 = vld [vmem:[%s3 + $0x2c] sm:$0xf]
        %v324 = vld [vmem:[%s3 + $0x30] sm:$0xf]
        %v325 = vld [vmem:[%s3 + $0x34] sm:$0xf]
        %v326 = vld [vmem:[%s3 + $0x38] sm:$0xf]
        %v327 = vld [vmem:[%s3 + $0x3c] sm:$0xf]
        %v332 = vunpack.c.l.b16 %v292
        %v333 = vunpack.c.l.b16 %v293
        %v334 = vunpack.c.l.b16 %v294
        %v335 = vunpack.c.l.b16 %v295
        %v336 = vpack.c.b16 %v333, %v332
        %v337 = vpack.c.b16 %v335, %v334
        %v356 = vunpack.c.l.b16 %v312
        %v357 = vunpack.c.l.b16 %v313
        %v358 = vunpack.c.l.b16 %v314
        %v359 = vunpack.c.l.b16 %v315
        %v360 = vunpack.c.l.b16 %v316
        %v361 = vunpack.c.l.b16 %v317
        %v362 = vunpack.c.l.b16 %v318
        %v363 = vunpack.c.l.b16 %v319
        %v364 = vunpack.c.l.b16 %v320
        %v365 = vunpack.c.l.b16 %v321
        %v366 = vunpack.c.l.b16 %v322
        %v367 = vunpack.c.l.b16 %v323
        %v368 = vunpack.c.l.b16 %v324
        %v369 = vunpack.c.l.b16 %v325
        %v370 = vunpack.c.l.b16 %v326
        %v371 = vunpack.c.l.b16 %v327
        %v372 = vpack.c.b16 %v357, %v356
        %v373 = vpack.c.b16 %v359, %v358
        %v374 = vpack.c.b16 %v361, %v360
        %v375 = vpack.c.b16 %v363, %v362
        %v376 = vpack.c.b16 %v365, %v364
        %v377 = vpack.c.b16 %v367, %v366
        %v378 = vpack.c.b16 %v369, %v368
        %v379 = vpack.c.b16 %v371, %v370
        %388 = vmatpush.bf16.msra.mxu0 %v379
        %389 = vmatpush.bf16.msra.mxu0 %v378
        %390 = vmatpush.bf16.msra.mxu0 %v377
        %391 = vmatpush.bf16.msra.mxu0 %v376
        %392 = vmatpush.bf16.msra.mxu0 %v375
        %393 = vmatpush.bf16.msra.mxu0 %v374
        %394 = vmatpush.bf16.msra.mxu0 %v373
        %395 = vmatpush.bf16.msra.mxu0 %v372
        %396 = vmatmul.bf16.gmra.mxu0 %v336
        %v397 = vpop.f32.mrf.mxu0
        %v398 = vadd.f32 0.0, %v397
        %v399 = vpop.f32.mrf.mxu0
        %v400 = vadd.f32 0.0, %v399
        %401 = vmatmul.bf16.gmra.mxu0 %v337
        %v402 = vpop.f32.mrf.mxu0
        %v403 = vadd.f32 0.0, %v402
        %v404 = vpop.f32.mrf.mxu0
        %v405 = vadd.f32 0.0, %v404
        %406 = vdwg.mxu0
        %v407 = vld [vmem:[%s284] sm:$0xf]
        %408 = vmatpush.bf16.msra.mxu0 %v379
        %409 = vmatpush.bf16.msra.mxu0 %v378
        %410 = vmatpush.bf16.msra.mxu0 %v377
        %411 = vmatpush.bf16.msra.mxu0 %v376
        %412 = vmatpush.bf16.msra.mxu0 %v375
        %413 = vmatpush.bf16.msra.mxu0 %v374
        %414 = vmatpush.bf16.msra.mxu0 %v373
        %415 = vmatpush.bf16.msra.mxu0 %v372
        %416 = vmatmul.bf16.gmra.mxu0 %v407
        %v417 = vpop.f32.mrf.mxu0
        %v418 = vadd.f32 0.0, %v417
        %v419 = vpop.f32.mrf.mxu0
        %420 = vdwg.mxu0
        %vm425 = vcmask 1046528
        %v426 = vrot.slane %v398, 1
        %v427 = vrot.slane %v400, 1
        %v428 = vsel %vm425, %v426, %v427
        %v429 = vrot.slane %v403, 1
        %v430 = vsel %vm425, %v427, %v429
        %v431 = vrot.slane %v405, 1
        %v432 = vsel %vm425, %v429, %v431
        %v438 = vrot.slane %v418, 1
        %v440 = vsel %vm425, %v431, %v438
        %v457 = vunpack.c.l.b16 %v296
        %v458 = vunpack.c.l.b16 %v297
        %v459 = vunpack.c.l.b16 %v298
        %v460 = vunpack.c.l.b16 %v299
        %v461 = vunpack.c.l.b16 %v300
        %v462 = vunpack.c.l.b16 %v301
        %v463 = vunpack.c.l.b16 %v302
        %v464 = vunpack.c.l.b16 %v303
        %v465 = vunpack.c.l.b16 %v304
        %v466 = vunpack.c.l.b16 %v305
        %v467 = vunpack.c.l.b16 %v306
        %v468 = vunpack.c.l.b16 %v307
        %v469 = vunpack.c.l.b16 %v308
        %v470 = vunpack.c.l.b16 %v309
        %v471 = vunpack.c.l.b16 %v310
        %v472 = vunpack.c.l.b16 %v311
        %v473 = vpack.c.b16 %v458, %v457
        %v474 = vpack.c.b16 %v460, %v459
        %v475 = vpack.c.b16 %v462, %v461
        %v476 = vpack.c.b16 %v464, %v463
        %v477 = vpack.c.b16 %v466, %v465
        %v478 = vpack.c.b16 %v468, %v467
        %v479 = vpack.c.b16 %v470, %v469
        %v480 = vpack.c.b16 %v472, %v471
        %489 = vmatpush.bf16.msra.mxu0 %v480
        %490 = vmatpush.bf16.msra.mxu0 %v479
        %491 = vmatpush.bf16.msra.mxu0 %v478
        %492 = vmatpush.bf16.msra.mxu0 %v477
        %493 = vmatpush.bf16.msra.mxu0 %v476
        %494 = vmatpush.bf16.msra.mxu0 %v475
        %495 = vmatpush.bf16.msra.mxu0 %v474
        %496 = vmatpush.bf16.msra.mxu0 %v473
        %497 = vmatmul.bf16.gmra.mxu0 %v336
        %v498 = vpop.f32.mrf.mxu0
        %v499 = vadd.f32 %v428, %v498
        %v500 = vpop.f32.mrf.mxu0
        %v501 = vadd.f32 %v430, %v500
        %502 = vmatmul.bf16.gmra.mxu0 %v337
        %v503 = vpop.f32.mrf.mxu0
        %v504 = vadd.f32 %v432, %v503
        %v505 = vpop.f32.mrf.mxu0
        %v506 = vadd.f32 %v440, %v505
        %507 = vdwg.mxu0
        %508 = vst [vmem:[%s256] sm:$0xff] %v499
        %509 = vst [vmem:[%s256 + $0x8] sm:$0xff] %v501
        %510 = vst [vmem:[%s256 + $0x10] sm:$0xff] %v504
        %511 = vst [vmem:[%s256 + $0x18] sm:$0xff] %v506
        %s512 = sand.u32 %s139, 1
        %s513 = sand.u32 %s139, 1
        %s514 = smul.addr %s513, 32
        %s515 = scalar_lea.vmem [#allocation2], %s514
        // Predicated region
        $region37: #{mdct.1} parent=35 // pred_check
          %p516 = pneg %p149
        $region38: #{mdct.1} parent=35 // pred_check_branch
          %518 = sbr.rel (%p516) target = $region40
        $region39: #{mdct.1} parent=35 // pred_region
          %s519 = smul.u32 4, %s20
          %s520 = ssub.s32 5, %s519
          %p521 = scmp.lt.s32.totalorder %s520, 4
          %s522 = scalar_select %p521, %s520, 4
          %s523 = smul.u32 8, %s522
          %p524 = scmp.ne.s32.totalorder 0, %s523
          %s525 = smul.addr %s19, 5
          %s526 = sadd.s32 %s519, %s525
          %s527 = smul.addr %s526, 8
          %s528 = scalar_lea.vmem %s4, %s527
          // Predicated region
          $region41: #{mdct.1} parent=39 // pred_check
            %p529 = pneg %p524
          $region42: #{mdct.1} parent=39 // pred_check_branch
            %531 = sbr.rel (%p529) target = $region44
          $region43: #{mdct.1} parent=39 // pred_region
            // Predicated region
            $region45: #{mdct.1} parent=43 // pred_check
              _
            $region46: #{mdct.1} parent=43 // pred_check_branch
              %533 = sbr.rel (0) target = $region48
            $region47: #{mdct.1} parent=43 // pred_region
              // Predicated region
              $region67: #{mdct.1} parent=47 // pred_check
                _
              $region68: #{mdct.1} parent=47 // pred_check_branch
                %589 = sbr.rel (0) target = $region70
              $region69: #{mdct.1} parent=47 // pred_region
                %s590 = sshrl.u32 %s522, 2
                // While loop
                $region71: #{mdct.1} parent=69 // loop_pre_header
                  _
                $region72: #{mdct.1} parent=69 // loop_header
                  %s592 = sphi 0, %s594
                  %p593 = scmp.ge.s32.totalorder %s592, %s590
                  %s597 = sphi 0, %s610
                  %s598 = sphi %s515, %s613
                  %s599 = sphi %s528, %s614
                $region73: #{mdct.1} parent=69 // loop_header_branch
                  %596 = sbr.rel (%p593) target = $region77
                $region74: #{mdct.1} parent=69 // loop_body
                  %v600 = vld [vmem:[%s598] sm:$0xff]
                  %601 = vst [vmem:[%s599] sm:$0xff] %v600
                  %v602 = vld [vmem:[%s598 + $0x8] sm:$0xff]
                  %603 = vst [vmem:[%s599 + $0x8] sm:$0xff] %v602
                  %v604 = vld [vmem:[%s598 + $0x10] sm:$0xff]
                  %605 = vst [vmem:[%s599 + $0x10] sm:$0xff] %v604
                  %v606 = vld [vmem:[%s598 + $0x18] sm:$0xff]
                  %607 = vst [vmem:[%s599 + $0x18] sm:$0xff] %v606
                  %s608 = sadd.s32 1, %s597
                  %p609 = scmp.ge.s32.totalorder %s608, %s590
                  %s610 = scalar_select %p609, 0, %s608
                  %s611 = smul.u32 %s610, 32
                  %s612 = smul.u32 %s610, 32
                  %s613 = scalar_lea.vmem %s515, %s611 [#allocation2]
                  %s614 = scalar_lea.vmem %s528, %s612
                $region75: #{mdct.1} parent=69 // loop_footer
                  %s594 = sadd.s32 %s592, 1
                $region76: #{mdct.1} parent=69 // loop_footer_branch
                  %591 = sbr.rel target = $region72
                $region77: #{mdct.1} parent=69 // loop_exit
                  _
                %s615 = sshrl.u32 %s522, 2
                %s616 = sand.u32 %s522, 3
                %s617 = smul.u32 %s615, 4
                %s618 = smul.u32 8, %s617
                %s619 = scalar_lea.vmem %s515, %s618 [#allocation2]
                %s620 = smul.u32 8, %s617
                %s621 = scalar_lea.vmem %s528, %s620
                // While loop
                $region78: #{mdct.1} parent=69 // loop_pre_header
                  _
                $region79: #{mdct.1} parent=69 // loop_header
                  %s623 = sphi 0, %s625
                  %p624 = scmp.ge.s32.totalorder %s623, %s616
                  %s628 = sphi 0, %s635
                  %s629 = sphi %s619, %s638
                  %s630 = sphi %s621, %s639
                $region80: #{mdct.1} parent=69 // loop_header_branch
                  %627 = sbr.rel (%p624) target = $region84
                $region81: #{mdct.1} parent=69 // loop_body
                  %v631 = vld [vmem:[%s629] sm:$0xff]
                  %632 = vst [vmem:[%s630] sm:$0xff] %v631
                  %s633 = sadd.s32 1, %s628
                  %p634 = scmp.ge.s32.totalorder %s633, %s616
                  %s635 = scalar_select %p634, 0, %s633
                  %s636 = smul.u32 %s635, 8
                  %s637 = smul.u32 %s635, 8
                  %s638 = scalar_lea.vmem %s619, %s636 [#allocation2]
                  %s639 = scalar_lea.vmem %s621, %s637
                $region82: #{mdct.1} parent=69 // loop_footer
                  %s625 = sadd.s32 %s623, 1
                $region83: #{mdct.1} parent=69 // loop_footer_branch
                  %622 = sbr.rel target = $region79
                $region84: #{mdct.1} parent=69 // loop_exit
                  _
              $region70: #{mdct.1} parent=47 // pred_fallthru
                _
              // Predicated region
              $region85: #{mdct.1} parent=47 // pred_check
                _
              $region86: #{mdct.1} parent=47 // pred_check_branch
                %641 = sbr.rel target = $region88
              $region87: #{mdct.1} parent=47 // pred_region
                _
              $region88: #{mdct.1} parent=47 // pred_fallthru
                _
            $region48: #{mdct.1} parent=43 // pred_fallthru
              _
            // Predicated region
            $region49: #{mdct.1} parent=43 // pred_check
              _
            $region50: #{mdct.1} parent=43 // pred_check_branch
              %535 = sbr.rel target = $region52
            $region51: #{mdct.1} parent=43 // pred_region
              %s537 = ssub.s32 256, 1
              %s538 = sshrl.u32 %s522, 2
              // While loop
              $region53: #{mdct.1} parent=51 // loop_pre_header
                _
              $region54: #{mdct.1} parent=51 // loop_header
                %s540 = sphi 0, %s542
                %p541 = scmp.ge.s32.totalorder %s540, %s538
                %s545 = sphi 0, %s558
                %s546 = sphi %s515, %s561
                %s547 = sphi %s528, %s562
              $region55: #{mdct.1} parent=51 // loop_header_branch
                %544 = sbr.rel (%p541) target = $region59
              $region56: #{mdct.1} parent=51 // loop_body
                %v548 = vld [vmem:[%s546] sm:%s537]
                %549 = vst [vmem:[%s547] sm:%s537] %v548
                %v550 = vld [vmem:[%s546 + $0x8] sm:%s537]
                %551 = vst [vmem:[%s547 + $0x8] sm:%s537] %v550
                %v552 = vld [vmem:[%s546 + $0x10] sm:%s537]
                %553 = vst [vmem:[%s547 + $0x10] sm:%s537] %v552
                %v554 = vld [vmem:[%s546 + $0x18] sm:%s537]
                %555 = vst [vmem:[%s547 + $0x18] sm:%s537] %v554
                %s556 = sadd.s32 1, %s545
                %p557 = scmp.ge.s32.totalorder %s556, %s538
                %s558 = scalar_select %p557, 0, %s556
                %s559 = smul.u32 %s558, 32
                %s560 = smul.u32 %s558, 32
                %s561 = scalar_lea.vmem %s515, %s559 [#allocation2]
                %s562 = scalar_lea.vmem %s528, %s560
              $region57: #{mdct.1} parent=51 // loop_footer
                %s542 = sadd.s32 %s540, 1
              $region58: #{mdct.1} parent=51 // loop_footer_branch
                %539 = sbr.rel target = $region54
              $region59: #{mdct.1} parent=51 // loop_exit
                _
              %s563 = sshrl.u32 %s522, 2
              %s564 = sand.u32 %s522, 3
              %s565 = smul.u32 %s563, 4
              %s566 = smul.u32 8, %s565
              %s567 = scalar_lea.vmem %s515, %s566 [#allocation2]
              %s568 = smul.u32 8, %s565
              %s569 = scalar_lea.vmem %s528, %s568
              // While loop
              $region60: #{mdct.1} parent=51 // loop_pre_header
                _
              $region61: #{mdct.1} parent=51 // loop_header
                %s571 = sphi 0, %s573
                %p572 = scmp.ge.s32.totalorder %s571, %s564
                %s576 = sphi 0, %s583
                %s577 = sphi %s567, %s586
                %s578 = sphi %s569, %s587
              $region62: #{mdct.1} parent=51 // loop_header_branch
                %575 = sbr.rel (%p572) target = $region66
              $region63: #{mdct.1} parent=51 // loop_body
                %v579 = vld [vmem:[%s577] sm:%s537]
                %580 = vst [vmem:[%s578] sm:%s537] %v579
                %s581 = sadd.s32 1, %s576
                %p582 = scmp.ge.s32.totalorder %s581, %s564
                %s583 = scalar_select %p582, 0, %s581
                %s584 = smul.u32 %s583, 8
                %s585 = smul.u32 %s583, 8
                %s586 = scalar_lea.vmem %s567, %s584 [#allocation2]
                %s587 = scalar_lea.vmem %s569, %s585
              $region64: #{mdct.1} parent=51 // loop_footer
                %s573 = sadd.s32 %s571, 1
              $region65: #{mdct.1} parent=51 // loop_footer_branch
                %570 = sbr.rel target = $region61
              $region66: #{mdct.1} parent=51 // loop_exit
                _
            $region52: #{mdct.1} parent=43 // pred_fallthru
              _
          $region44: #{mdct.1} parent=39 // pred_fallthru
            _
          %642 = vnop
        $region40: #{mdct.1} parent=35 // pred_fallthru
          _
      $region36: #{mdct.1} parent=5 // pred_fallthru
        _
      %p643 = scmp.le.s32.totalorder 2, %s10
      // Predicated region
      $region89: #{mdct.1} parent=5 // pred_check
        %p644 = pneg %p643
      $region90: #{mdct.1} parent=5 // pred_check_branch
        %646 = sbr.rel (%p644) target = $region92
      $region91: #{mdct.1} parent=5 // pred_region
        %s647 = ssub.s32 %s10, 2
        // Predicated region
        $region93: #{mdct.1} parent=91 // pred_check
          %p648 = pneg %p155
        $region94: #{mdct.1} parent=91 // pred_check_branch
          %650 = sbr.rel (%p648) target = $region96
        $region95: #{mdct.1} parent=91 // pred_region
          %s651 = sand.u32 %s140, 1
          %s652 = sand.u32 %s140, 1
          %s653 = smul.addr %s652, 32
          %s654 = scalar_lea.vmem [#allocation2], %s653
        $region96: #{mdct.1} parent=91 // pred_fallthru
          _
      $region92: #{mdct.1} parent=5 // pred_fallthru
        _
    $region6: #{mdct.1} parent=1 // loop_footer
      %s14 = sadd.s32 1, %s10
    $region7: #{mdct.1} parent=1 // loop_footer_branch
      %9 = sbr.rel target = $region3
    $region8: #{mdct.1} parent=1 // loop_exit
      _

</llo_original>
